<compile_context>
chip_gen: v7x
topology: tpu7x:2x2x1
jax: 0.10.0
libtpu: 0.0.40
codegen_flags: <defaults>
</compile_context>

<pallas_src>
import functools

import numpy as np
import jax
import jax.numpy as jnp
from jax.experimental import pallas as pl
from jax.experimental.pallas import tpu as pltpu


def nll_kernel(inter_ref, w_ref, b_ref, z_ref, out_ref, logdet_acc,
               *, weights_resident):
    # grid = (batch_tile, layer); layer MUST stay the innermost ("arbitrary")
    # axis: the accumulator init below is gated on l == 0.
    l = pl.program_id(1)

    @pl.when(l == 0)
    def _():
        logdet_acc[...] = jnp.zeros_like(logdet_acc)

    # Lower half of this layer's intermediate (already narrowed by the DMA).
    x = inter_ref[...].astype(jnp.float32)                         # (TB, half)
    wl = l if weights_resident else 0
    w = w_ref[wl].astype(jnp.float32)                              # (half, half)
    b = b_ref[wl].astype(jnp.float32)                              # (1, half)

    pre = jnp.dot(x, w, preferred_element_type=jnp.float32) + b    # (TB, half)
    # Per-layer row reduction on the XLU (separate VLIW slot -> ~free);
    # keeps the accumulator at (TB, 1) instead of (TB, half).
    # TODO(synk): log(softplus(pre)) underflows to -inf for pre <~ -88 in f32,
    # matching the naive reference; swap in a stable log-softplus if the real
    # scaling module uses one.
    logdet_acc[...] += jnp.sum(jnp.log(jax.nn.softplus(pre)),
                               axis=1, keepdims=True)              # (TB, 1)

    @pl.when(l == pl.num_programs(1) - 1)
    def _():
        z = z_ref[...].astype(jnp.float32)                         # (TB, D)
        zterm = 0.5 * jnp.sum(z * z, axis=1, keepdims=True)        # (TB, 1)
        # Per-tile partial SUM (not mean); mean is finished in the wrapper.
        out_ref[...] = jnp.reshape(jnp.sum(zterm - logdet_acc[...]), (1, 1, 1))


def _pick_batch_tile(B, half, D, *, target=1024,
                     vmem_budget_bytes=40 * 1024 * 1024):
    """Largest sublane-aligned divisor of B under the VMEM-derived cap."""
    # Per-row f32 VMEM: double-buffered lower-half intermediates block (2x),
    # double-buffered z block (2x), plus the (TB, 1) scratch accumulator.
    bytes_per_row = (2 * half + 2 * D + 1) * 4
    hard_cap = max(8, vmem_budget_bytes // max(bytes_per_row, 1))
    soft_cap = min(hard_cap, target, B)
    if B >= 16:
        # Prefer >= 2 batch tiles so dual-TensorCore chips (v7x) get both
        # cores busy on the "parallel" batch axis.
        soft_cap = min(soft_cap, max(8, B // 2))
    for t in range(soft_cap, 7, -1):
        if B % t == 0 and t % 8 == 0:
            return t
    # No aligned divisor found: one full-batch tile is valid (block == full
    # dim) as long as it fits the VMEM budget.
    if B <= hard_cap:
        return B
    raise ValueError(
        f"batch={B}: no multiple-of-8 divisor <= {soft_cap} and a full-batch "
        f"tile exceeds the VMEM budget; pad the batch to a multiple of 8 or "
        f"pass batch_tile= explicitly.")


def nll_loss_pallas(intermediates, z, weights, biases, data_dim, *,
                    batch_tile=None,
                    weight_vmem_budget_bytes=16 * 1024 * 1024):
    """intermediates: (L,B,D), z: (B,D), weights: (L,half,half), biases: (L,half)."""
    L, B, D = intermediates.shape
    half = data_dim // 2
    assert D == data_dim
    assert z.shape == (B, D)
    assert weights.shape == (L, half, half)
    assert biases.shape == (L, half)

    tb = batch_tile if batch_tile is not None else _pick_batch_tile(B, half, D)
    assert B % tb == 0, f"batch_tile={tb} must divide batch={B}"
    assert tb % 8 == 0 or tb == B, (
        f"batch_tile={tb} must be a multiple of 8 (or equal the full batch)")
    nbt = B // tb

    # Feed only the lower half of `intermediates`: narrow the BlockSpec when
    # half satisfies the (8,128) rule, otherwise pre-pack the lower halves
    # once in the wrapper.  Either way the kernel sees (tb, half) and the
    # dominant HBM stream is halved.
    if half == D or half % 128 == 0:
        inter_in = intermediates
    else:
        inter_in = intermediates[:, :, :half]   # one-time pack in XLA

    # Per-layer weights/biases: VMEM-resident (constant index map) when they
    # fit the budget; otherwise stream one layer per grid step (v7x fallback).
    w_resident_bytes = 2 * L * (half * half + half) * 4   # double-buffered
    weights_resident = w_resident_bytes <= weight_vmem_budget_bytes
    b3 = biases.reshape(L, 1, half)

    if weights_resident:
        w_spec = pl.BlockSpec((L, half, half), lambda bi, l: (0, 0, 0))
        b_spec = pl.BlockSpec((L, 1, half), lambda bi, l: (0, 0, 0))
        w_bytes = w_resident_bytes
    else:
        w_spec = pl.BlockSpec((1, half, half), lambda bi, l: (l, 0, 0))
        b_spec = pl.BlockSpec((1, 1, half), lambda bi, l: (l, 0, 0))
        w_bytes = 2 * 2 * (half * half + half) * 4

    # Explicit VMEM limit (scoped default is only 16 MiB on v5e / 32 MiB on
    # v6e+); clamp below v7x's 64 MiB physical VMEM per TensorCore.
    needed = (2 * (tb * half * 4 + tb * D * 4)     # intermediates + z (2x buf)
              + w_bytes                            # weights + biases
              + tb * 4                             # scratch accumulator
              + 2 * 4)                             # output block (2x buf)
    vmem_limit = int(min(max(needed + (4 << 20), 32 << 20), 60 << 20))

    kernel = functools.partial(nll_kernel, weights_resident=weights_resident)

    partials = pl.pallas_call(
        kernel,
        out_shape=jax.ShapeDtypeStruct((nbt, 1, 1), jnp.float32),
        grid_spec=pltpu.PrefetchScalarGridSpec(
            num_scalar_prefetch=0,
            grid=(nbt, L),   # layer axis innermost (reduction)
            in_specs=[
                # lower-half intermediates block for (layer, batch tile)
                pl.BlockSpec((pl.Squeezed(), tb, half),
                             lambda bi, l: (l, bi, 0)),
                w_spec,
                b_spec,
                # z: block index depends only on the batch tile -> one DMA/tile
                pl.BlockSpec((tb, D), lambda bi, l: (bi, 0)),
            ],
            out_specs=pl.BlockSpec((1, 1, 1), lambda bi, l: (bi, 0, 0)),
            scratch_shapes=[pltpu.VMEM((tb, 1), jnp.float32)],
        ),
        compiler_params=pltpu.CompilerParams(
            dimension_semantics=("parallel", "arbitrary"),
            vmem_limit_bytes=vmem_limit),
    )(inter_in, weights, b3, z)

    # Finish the batch mean outside the kernel (partials are per-tile sums).
    return jnp.sum(partials) / B


def nll_loss_ref(intermediates, z, weights, biases, data_dim):
    """Pure-JAX reference of the same forward pass."""
    half = data_dim // 2
    transformed = 0.5 * jnp.sum(z ** 2, axis=1)
    log_det = jnp.zeros(z.shape[0], dtype=jnp.float32)
    for i in range(intermediates.shape[0]):
        x = intermediates[i, :, :half]
        scaling = jax.nn.softplus(x @ weights[i] + biases[i])
        log_det = log_det + jnp.sum(jnp.log(scaling), axis=1)
    return jnp.mean(transformed - log_det)


if __name__ == "__main__":
    # Small shapes consistent with the module: L coupling layers, data_dim D.
    L = 4          # coupling_layers
    B = 8          # batch
    D = 32         # data_dim (even)
    half = D // 2

    key = jax.random.PRNGKey(0)
    k_int, k_z, k_w, k_b = jax.random.split(key, 4)

    intermediates = jax.random.normal(k_int, (L, B, D), dtype=jnp.float32)
    z = jax.random.normal(k_z, (B, D), dtype=jnp.float32)
    # Deterministic synthetic parameters for each coupling layer's scaling net.
    weights = 0.1 * jax.random.normal(k_w, (L, half, half), dtype=jnp.float32)
    biases = 0.05 * jax.random.normal(k_b, (L, half), dtype=jnp.float32)

    loss = nll_loss_pallas(intermediates, z, weights, biases, D)
    jax.block_until_ready(loss)

    ref = nll_loss_ref(intermediates, z, weights, biases, D)
    assert np.allclose(np.asarray(loss), np.asarray(ref), rtol=1e-5, atol=1e-5), (
        loss, ref)

    print("KERNEL_OK")
</pallas_src>

<mosaic_0001>
module attributes {stable_mosaic.version = 11 : i64} {
  func.func @nll_kernel(%arg0: i32, %arg1: i32, %arg2: memref<1x8x16xf32, #tpu.memory_space<vmem>>, %arg3: memref<4x16x16xf32, #tpu.memory_space<vmem>>, %arg4: memref<4x1x16xf32, #tpu.memory_space<vmem>>, %arg5: memref<8x32xf32, #tpu.memory_space<vmem>>, %arg6: memref<1x1x1xf32, #tpu.memory_space<vmem>>, %arg7: memref<8x1xf32, #tpu.memory_space<vmem>>) attributes {dimension_semantics = [#tpu.dimension_semantics<parallel>, #tpu.dimension_semantics<arbitrary>], iteration_bounds = array<i64: 1, 4>, scalar_prefetch = 0 : i64, scratch_operands = 1 : i64, tpu.core_type = #tpu.core_type<tc>, window_params = [{transform_indices = @transform_0, window_bounds = array<i64: 1, 8, 16>}, {pipeline_mode = #tpu.pipeline_mode<synchronous>, transform_indices = @transform_1, window_bounds = array<i64: 4, 16, 16>}, {pipeline_mode = #tpu.pipeline_mode<synchronous>, transform_indices = @transform_2, window_bounds = array<i64: 4, 1, 16>}, {transform_indices = @transform_3, window_bounds = array<i64: 8, 32>}, {transform_indices = @transform_4, window_bounds = array<i64: 1, 1, 1>}]} {
    %c0_i32 = arith.constant 0 : i32
    %0 = arith.cmpi eq, %arg1, %c0_i32 : i32
    %1 = arith.extui %0 : i1 to i32
    %c0_i32_0 = arith.constant 0 : i32
    %2 = arith.cmpi ne, %1, %c0_i32_0 : i32
    scf.if %2 {
      %cst_15 = arith.constant 0.000000e+00 : f32
      %37 = vector.broadcast %cst_15 : f32 to vector<8x1xf32>
      %c0_16 = arith.constant 0 : index
      %c0_17 = arith.constant 0 : index
      %38 = vector.load %arg7[%c0_16, %c0_17] : memref<8x1xf32, #tpu.memory_space<vmem>>, vector<8x1xf32>
      tpu.vector_store %arg7[%c0_16, %c0_17], %37 {strides = array<i32>} : memref<8x1xf32, #tpu.memory_space<vmem>>, vector<8x1xf32>,
    } else {
    }
    %c0 = arith.constant 0 : index
    %c0_1 = arith.constant 0 : index
    %c0_2 = arith.constant 0 : index
    %3 = vector.load %arg2[%c0, %c0_1, %c0_2] : memref<1x8x16xf32, #tpu.memory_space<vmem>>, vector<1x8x16xf32>
    %4 = vector.shape_cast %3 : vector<1x8x16xf32> to vector<8x16xf32>
    %5 = arith.index_cast %arg1 : i32 to index
    %c0_3 = arith.constant 0 : index
    %c0_4 = arith.constant 0 : index
    %6 = vector.load %arg3[%5, %c0_3, %c0_4] : memref<4x16x16xf32, #tpu.memory_space<vmem>>, vector<1x16x16xf32>
    %7 = vector.shape_cast %6 : vector<1x16x16xf32> to vector<16x16xf32>
    %8 = arith.index_cast %arg1 : i32 to index
    %c0_5 = arith.constant 0 : index
    %c0_6 = arith.constant 0 : index
    %9 = vector.load %arg4[%8, %c0_5, %c0_6] : memref<4x1x16xf32, #tpu.memory_space<vmem>>, vector<1x1x16xf32>
    %10 = vector.shape_cast %9 : vector<1x1x16xf32> to vector<1x16xf32>
    %cst = arith.constant dense<0.000000e+00> : vector<8x16xf32>
    %11 = tpu.matmul %4, %7, %cst {dimension_numbers = #tpu.dot_dimension_numbers<[1], [0], [0], [1], [0, 0, 1, 1], [], []>} : vector<8x16xf32>, vector<16x16xf32>, vector<8x16xf32> -> vector<8x16xf32>
    %12 = vector.broadcast %10 : vector<1x16xf32> to vector<8x16xf32>
    %13 = arith.addf %11, %12 : vector<8x16xf32>
    %c0_7 = arith.constant 0 : index
    %c0_8 = arith.constant 0 : index
    %14 = vector.load %arg7[%c0_7, %c0_8] : memref<8x1xf32, #tpu.memory_space<vmem>>, vector<8x1xf32>
    %cst_9 = arith.constant 0.000000e+00 : f32
    %15 = vector.broadcast %cst_9 : f32 to vector<8x16xf32>
    %16 = arith.maximumf %13, %15 : vector<8x16xf32>
    %17 = vector.broadcast %cst_9 : f32 to vector<8x16xf32>
    %18 = arith.subf %13, %17 : vector<8x16xf32>
    %19 = arith.cmpf one, %18, %18 : vector<8x16xf32>
    %20 = vector.broadcast %cst_9 : f32 to vector<8x16xf32>
    %21 = arith.addf %13, %20 : vector<8x16xf32>
    %22 = math.absf %18 : vector<8x16xf32>
    %cst_10 = arith.constant 0.000000e+00 : f32
    %23 = vector.broadcast %cst_10 : f32 to vector<8x16xf32>
    %24 = arith.subf %23, %22 : vector<8x16xf32>
    %25 = math.exp %24 : vector<8x16xf32>
    %26 = math.log1p %25 : vector<8x16xf32>
    %27 = arith.addf %16, %26 : vector<8x16xf32>
    %28 = arith.select %19, %21, %27 : vector<8x16xi1>, vector<8x16xf32>
    %29 = math.log %28 : vector<8x16xf32>
    %cst_11 = arith.constant dense<0.000000e+00> : vector<8xf32>
    %30 = vector.multi_reduction <add>, %29, %cst_11 [1] : vector<8x16xf32> to vector<8xf32>
    %31 = vector.shape_cast %30 : vector<8xf32> to vector<8x1xf32>
    %32 = arith.addf %14, %31 : vector<8x1xf32>
    %c0_12 = arith.constant 0 : index
    %c0_13 = arith.constant 0 : index
    %33 = vector.load %arg7[%c0_12, %c0_13] : memref<8x1xf32, #tpu.memory_space<vmem>>, vector<8x1xf32>
    tpu.vector_store %arg7[%c0_12, %c0_13], %32 {strides = array<i32>} : memref<8x1xf32, #tpu.memory_space<vmem>>, vector<8x1xf32>,
    %c3_i32 = arith.constant 3 : i32
    %34 = arith.cmpi eq, %arg1, %c3_i32 : i32
    %35 = arith.extui %34 : i1 to i32
    %c0_i32_14 = arith.constant 0 : i32
    %36 = arith.cmpi ne, %35, %c0_i32_14 : i32
    scf.if %36 {
      %c0_15 = arith.constant 0 : index
      %c0_16 = arith.constant 0 : index
      %37 = vector.load %arg5[%c0_15, %c0_16] : memref<8x32xf32, #tpu.memory_space<vmem>>, vector<8x32xf32>
      %38 = arith.mulf %37, %37 : vector<8x32xf32>
      %cst_17 = arith.constant dense<0.000000e+00> : vector<8xf32>
      %39 = vector.multi_reduction <add>, %38, %cst_17 [1] : vector<8x32xf32> to vector<8xf32>
      %40 = vector.shape_cast %39 : vector<8xf32> to vector<8x1xf32>
      %cst_18 = arith.constant 5.000000e-01 : f32
      %41 = vector.broadcast %cst_18 : f32 to vector<8x1xf32>
      %42 = arith.mulf %41, %40 : vector<8x1xf32>
      %c0_19 = arith.constant 0 : index
      %c0_20 = arith.constant 0 : index
      %43 = vector.load %arg7[%c0_19, %c0_20] : memref<8x1xf32, #tpu.memory_space<vmem>>, vector<8x1xf32>
      %44 = arith.subf %42, %43 : vector<8x1xf32>
      %45 = vector.shape_cast %44 : vector<8x1xf32> to vector<1x8x1xf32>
      %cst_21 = arith.constant dense<0.000000e+00> : vector<1xf32>
      %46 = vector.multi_reduction <add>, %45, %cst_21 [1, 2] : vector<1x8x1xf32> to vector<1xf32>
      %47 = vector.shape_cast %46 : vector<1xf32> to vector<1x1x1xf32>
      %48 = vector.extract %47[0, 0, 0] : f32 from vector<1x1x1xf32>
      %49 = vector.broadcast %48 : f32 to vector<1x1x1xf32>
      %c0_22 = arith.constant 0 : index
      %c0_23 = arith.constant 0 : index
      %c0_24 = arith.constant 0 : index
      %50 = vector.load %arg6[%c0_22, %c0_23, %c0_24] : memref<1x1x1xf32, #tpu.memory_space<vmem>>, vector<1x1x1xf32>
      tpu.vector_store %arg6[%c0_22, %c0_23, %c0_24], %49 {strides = array<i32>} : memref<1x1x1xf32, #tpu.memory_space<vmem>>, vector<1x1x1xf32>,
    } else {
    }
    return
  }
  func.func @transform_0(%arg0: i32, %arg1: i32) -> (i32, i32, i32) {
    %c0_i32 = arith.constant 0 : i32
    %c0_i32_0 = arith.constant 0 : i32
    return %arg1, %arg0, %c0_i32 : i32, i32, i32
  }
  func.func @transform_1(%arg0: i32, %arg1: i32) -> (i32, i32, i32) {
    %c0_i32 = arith.constant 0 : i32
    %c0_i32_0 = arith.constant 0 : i32
    %c0_i32_1 = arith.constant 0 : i32
    %c0_i32_2 = arith.constant 0 : i32
    return %c0_i32, %c0_i32_0, %c0_i32_1 : i32, i32, i32
  }
  func.func @transform_2(%arg0: i32, %arg1: i32) -> (i32, i32, i32) {
    %c0_i32 = arith.constant 0 : i32
    %c0_i32_0 = arith.constant 0 : i32
    %c0_i32_1 = arith.constant 0 : i32
    %c0_i32_2 = arith.constant 0 : i32
    return %c0_i32, %c0_i32_0, %c0_i32_1 : i32, i32, i32
  }
  func.func @transform_3(%arg0: i32, %arg1: i32) -> (i32, i32) {
    %c0_i32 = arith.constant 0 : i32
    %c0_i32_0 = arith.constant 0 : i32
    return %arg0, %c0_i32 : i32, i32
  }
  func.func @transform_4(%arg0: i32, %arg1: i32) -> (i32, i32, i32) {
    %c0_i32 = arith.constant 0 : i32
    %c0_i32_0 = arith.constant 0 : i32
    %c0_i32_1 = arith.constant 0 : i32
    return %arg0, %c0_i32, %c0_i32_0 : i32, i32, i32
  }
}

</mosaic_0001>

<llo_original>
// kernel: tpu_custom_call.1
$region0: #{tpu_custom_call.1}
  #allocation0 [shape = 'u32[]', space=smem, size = 0x4, offset = 0x4, fixed_abs, tag = 'smem constant byte address 0x4 - core index']
  #allocation1 [shape = 'u32[144,128]{1,0:T(1,128)}', space=vmem, size = 0x12000, scoped, tag = 'internal scratch']
  #allocation2 [shape = 'f32[8,1]{1,0:T(8,128)}', space=vmem, size = 0x1000, scoped, tag = 'scratch operand']
  %s0 = inlined_call_operand.hbm [shape: f32[4,8,16], index: 0, kind: input, shape index: {}]
  %s1 = inlined_call_operand.hbm [shape: f32[4,16,16], index: 1, kind: input, shape index: {}]
  %s2 = inlined_call_operand.hbm [shape: f32[4,1,16], index: 2, kind: input, shape index: {}]
  %s3 = inlined_call_operand.vmem [shape: f32[8,32], index: 3, kind: input, shape index: {}]
  %s4 = inlined_call_operand.hbm [shape: f32[1,1,1], index: 4, kind: output, shape index: {}]
  %s5 = sld [smem:[#allocation0]]
  $region69: #{tpu_custom_call.1} parent=0
    _
  %s7 = ssub.s32 1, %s5
  %s8 = scalar_select 0, %s7, %s5
  $region1: #{tpu_custom_call.1} parent=0
    #allocation3 [shape = 'u8[8192]{0}', space=vmem, size = 0x2000, scoped, tag = 'input window, operand 0']
    #allocation4 [shape = 's32[2]{0}', space=sflag, size = 0x8, scoped, tag = 'scoped memory for tpu_custom_call.1']
    #allocation5 [shape = 's32[2]{0}', space=sflag, size = 0x8, scoped, tag = 'scoped memory for tpu_custom_call.1']
    #allocation6 [shape = 'u8[32768]{0}', space=vmem, size = 0x8000, scoped, tag = 'input window, operand 1, single buffered']
    #allocation7 [shape = 's32[1]{0}', space=sflag, size = 0x4, scoped, tag = 'scoped memory for tpu_custom_call.1']
    #allocation8 [shape = 'u8[2048]{0}', space=vmem, size = 0x800, scoped, tag = 'input window, operand 2, single buffered']
    #allocation9 [shape = 'u8[512]{0}', space=vmem, size = 0x400, scoped, tag = 'output window, operand 0, single buffered']
    %9 = vsyncpa [#allocation4], 0
    %s10 = scalar_lea.sflag [#allocation4], 1
    %11 = vsyncpa %s10, 0
    %12 = vsyncpa [#allocation7], 0
    %13 = vsyncpa [#allocation5], 0
    loop: start=0, step=1, limit=6
    $region2: #{tpu_custom_call.1} parent=1 // loop_pre_header
      _
    $region3: #{tpu_custom_call.1} parent=1 // loop_header
      %s15 = sphi 0, %s19
      %p16 = scmp.ge.s32.totalorder %s15, 6
      %s22 = sphi 0, %s34
      %s23 = sphi 0, %s30
      %s24 = sphi 0, %s22
      %s25 = sphi 0, %s23
      %s26 = sphi 0, %s24
      %s27 = sphi 0, %s25
      %s39 = sphi 0, %s41
      %s42 = sphi 0, %s39
      %s43 = sphi 0, %s42
      %s59 = sphi 0, %s43
      %s63 = sphi 0, %s63
      %s65 = sphi 0, %s63
      %s66 = sphi 0, %s65
      %s80 = sphi 0, %s66
      %s84 = sphi 0, %s84
      %s86 = sphi 0, %s84
      %s87 = sphi 0, %s86
      %s101 = sphi 0, %s87
      %s107 = sphi 0, %s109
      %s110 = sphi 0, %s107
      %s111 = sphi 0, %s110
      %s127 = sphi 0, %s111
      %s133 = sphi 0, %s135
      %s136 = sphi 0, %s133
      %s137 = sphi 0, %s136
      %s153 = sphi 0, %s137
    $region4: #{tpu_custom_call.1} parent=1 // loop_header_branch
      %18 = sbr.rel (%p16) target = $region8
    $region5: #{tpu_custom_call.1} parent=1 // loop_body
      %s20 = ssub.s32 %s15, 1
      %s21 = ssub.s32 %s15, 2
      %s28 = sadd.s32 1, %s23
      %p29 = scmp.ge.s32.totalorder %s28, 4
      %s30 = scalar_select %p29, 0, %s28
      %s31 = sadd.s32 1, %s22
      %s32 = scalar_select %p29, %s31, %s22
      %p33 = scmp.ge.s32.totalorder %s32, 1
      %s34 = scalar_select %p33, 0, %s32
      %s35 = ssub.s32 %s23, %s30
      %s36 = ssub.s32 %s22, %s34
      %s37 = sor.u32 %s35, %s36
      %p38 = scmp.eq.s32.totalorder %s37, 0
      %s40 = sadd.s32 %s39, 1
      %s41 = scalar_select %p38, %s39, %s40
      %p44 = pneg %p38
      %p45 = scmp.eq.s32.totalorder %s15, 3
      %p46 = por %p44, %p45
      %p47 = scmp.ne.s32.totalorder %s39, %s42
      %p48 = scmp.eq.s32.totalorder %s15, 0
      %p49 = por %p47, %p48
      %p50 = scmp.ne.s32.totalorder %s39, %s42
      %p51 = scmp.eq.s32.totalorder %s20, 3
      %p52 = por %p50, %p51
      %p53 = scmp.ne.s32.totalorder %s42, %s43
      %p54 = scmp.eq.s32.totalorder %s20, 0
      %p55 = por %p53, %p54
      %p56 = scmp.ne.s32.totalorder %s42, %s43
      %p57 = scmp.eq.s32.totalorder %s21, 3
      %p58 = por %p56, %p57
      %p60 = scmp.ne.s32.totalorder %s43, %s59
      %p61 = scmp.eq.s32.totalorder %s21, 0
      %p62 = por %p60, %p61
      %s64 = sadd.s32 %s63, 1
      %p67 = scmp.eq.s32.totalorder %s15, 3
      %p68 = scmp.ne.s32.totalorder %s63, %s65
      %p69 = scmp.eq.s32.totalorder %s15, 0
      %p70 = por %p68, %p69
      %p71 = scmp.ne.s32.totalorder %s63, %s65
      %p72 = scmp.eq.s32.totalorder %s20, 3
      %p73 = por %p71, %p72
      %p74 = scmp.ne.s32.totalorder %s65, %s66
      %p75 = scmp.eq.s32.totalorder %s20, 0
      %p76 = por %p74, %p75
      %p77 = scmp.ne.s32.totalorder %s65, %s66
      %p78 = scmp.eq.s32.totalorder %s21, 3
      %p79 = por %p77, %p78
      %p81 = scmp.ne.s32.totalorder %s66, %s80
      %p82 = scmp.eq.s32.totalorder %s21, 0
      %p83 = por %p81, %p82
      %s85 = sadd.s32 %s84, 1
      %p88 = scmp.eq.s32.totalorder %s15, 3
      %p89 = scmp.ne.s32.totalorder %s84, %s86
      %p90 = scmp.eq.s32.totalorder %s15, 0
      %p91 = por %p89, %p90
      %p92 = scmp.ne.s32.totalorder %s84, %s86
      %p93 = scmp.eq.s32.totalorder %s20, 3
      %p94 = por %p92, %p93
      %p95 = scmp.ne.s32.totalorder %s86, %s87
      %p96 = scmp.eq.s32.totalorder %s20, 0
      %p97 = por %p95, %p96
      %p98 = scmp.ne.s32.totalorder %s86, %s87
      %p99 = scmp.eq.s32.totalorder %s21, 3
      %p100 = por %p98, %p99
      %p102 = scmp.ne.s32.totalorder %s87, %s101
      %p103 = scmp.eq.s32.totalorder %s21, 0
      %p104 = por %p102, %p103
      %s105 = ssub.s32 %s22, %s34
      %p106 = scmp.eq.s32.totalorder %s105, 0
      %s108 = sadd.s32 %s107, 1
      %s109 = scalar_select %p106, %s107, %s108
      %p112 = pneg %p106
      %p113 = scmp.eq.s32.totalorder %s15, 3
      %p114 = por %p112, %p113
      %p115 = scmp.ne.s32.totalorder %s107, %s110
      %p116 = scmp.eq.s32.totalorder %s15, 0
      %p117 = por %p115, %p116
      %p118 = scmp.ne.s32.totalorder %s107, %s110
      %p119 = scmp.eq.s32.totalorder %s20, 3
      %p120 = por %p118, %p119
      %p121 = scmp.ne.s32.totalorder %s110, %s111
      %p122 = scmp.eq.s32.totalorder %s20, 0
      %p123 = por %p121, %p122
      %p124 = scmp.ne.s32.totalorder %s110, %s111
      %p125 = scmp.eq.s32.totalorder %s21, 3
      %p126 = por %p124, %p125
      %p128 = scmp.ne.s32.totalorder %s111, %s127
      %p129 = scmp.eq.s32.totalorder %s21, 0
      %p130 = por %p128, %p129
      %s131 = ssub.s32 %s22, %s34
      %p132 = scmp.eq.s32.totalorder %s131, 0
      %s134 = sadd.s32 %s133, 1
      %s135 = scalar_select %p132, %s133, %s134
      %p138 = pneg %p132
      %p139 = scmp.eq.s32.totalorder %s15, 3
      %p140 = por %p138, %p139
      %p141 = scmp.ne.s32.totalorder %s133, %s136
      %p142 = scmp.eq.s32.totalorder %s15, 0
      %p143 = por %p141, %p142
      %p144 = scmp.ne.s32.totalorder %s133, %s136
      %p145 = scmp.eq.s32.totalorder %s20, 3
      %p146 = por %p144, %p145
      %p147 = scmp.ne.s32.totalorder %s136, %s137
      %p148 = scmp.eq.s32.totalorder %s20, 0
      %p149 = por %p147, %p148
      %p150 = scmp.ne.s32.totalorder %s136, %s137
      %p151 = scmp.eq.s32.totalorder %s21, 3
      %p152 = por %p150, %p151
      %p154 = scmp.ne.s32.totalorder %s137, %s153
      %p155 = scmp.eq.s32.totalorder %s21, 0
      %p156 = por %p154, %p155
      %p157 = scmp.le.s32.totalorder 1, %s15
      %p158 = scmp.lt.s32.totalorder %s15, 5
      %p159 = pnand %p157, %p158
      %p160 = pneg %p159
      // Predicated region
      $region9: #{tpu_custom_call.1} parent=5 // pred_check
        _
      $region10: #{tpu_custom_call.1} parent=5 // pred_check_branch
        %162 = sbr.rel (%p159) target = $region12
      $region11: #{tpu_custom_call.1} parent=5 // pred_region
        %s163 = ssub.s32 %s15, 1
        // Predicated region
        $region13: #{tpu_custom_call.1} parent=11 // pred_check
          %p164 = pneg %p76
        $region14: #{tpu_custom_call.1} parent=11 // pred_check_branch
          %166 = sbr.rel (%p164) target = $region16
        $region15: #{tpu_custom_call.1} parent=11 // pred_region
          %s168 = ssub.s32 1024, 1024
          %169 = vsyncadd [#allocation7], %s168
          %s170 = sshll.u32 [#allocation6], 4
          %s171 = int_to_ptr.vmem [resolvable:$true] %s170
          %176 = dma.hbm_to_vmem [thread:$0]  %s1, 1024, %s171, [#allocation7], 128, 128, 8
        $region16: #{tpu_custom_call.1} parent=11 // pred_fallthru
          _
        // Predicated region
        $region17: #{tpu_custom_call.1} parent=11 // pred_check
          %p177 = pneg %p97
        $region18: #{tpu_custom_call.1} parent=11 // pred_check_branch
          %179 = sbr.rel (%p177) target = $region20
        $region19: #{tpu_custom_call.1} parent=11 // pred_region
          %s181 = ssub.s32 64, 64
          %182 = vsyncadd [#allocation7], %s181
          %s183 = sshll.u32 [#allocation8], 4
          %s184 = int_to_ptr.vmem [resolvable:$true] %s183
          %189 = dma.hbm_to_vmem [thread:$0]  %s2, 64, %s184, [#allocation7], 16, 16, 1
        $region20: #{tpu_custom_call.1} parent=11 // pred_fallthru
          _
        // Predicated region
        $region21: #{tpu_custom_call.1} parent=11 // pred_check
          %p190 = pneg %p123
        $region22: #{tpu_custom_call.1} parent=11 // pred_check_branch
          %192 = sbr.rel (%p190) target = $region24
        $region23: #{tpu_custom_call.1} parent=11 // pred_region
          %p193 = scmp.lt.s32.totalorder %s24, 0
          %s194 = scalar_select %p193, %s24, 0
          %s195 = smul.addr %s194, 8
          %s196 = scalar_lea.vmem %s3, %s195
        $region24: #{tpu_custom_call.1} parent=11 // pred_fallthru
          _
      $region12: #{tpu_custom_call.1} parent=5 // pred_fallthru
        _
      %p197 = scmp.lt.s32.totalorder %s15, 4
      // Predicated region
      $region25: #{tpu_custom_call.1} parent=5 // pred_check
        %p198 = pneg %p197
      $region26: #{tpu_custom_call.1} parent=5 // pred_check_branch
        %200 = sbr.rel (%p198) target = $region28
      $region27: #{tpu_custom_call.1} parent=5 // pred_region
        // Predicated region
        $region29: #{tpu_custom_call.1} parent=27 // pred_check
          %p201 = pneg %p49
        $region30: #{tpu_custom_call.1} parent=27 // pred_check_branch
          %203 = sbr.rel (%p201) target = $region32
        $region31: #{tpu_custom_call.1} parent=27 // pred_region
          %s204 = sand.u32 %s39, 1
          %s205 = scalar_lea.sflag [#allocation4], %s204
          %s206 = sand.u32 %s39, 1
          %s207 = smul.addr %s206, 8
          %s208 = scalar_lea.vmem [#allocation3], %s207
          %s210 = ssub.s32 128, 128
          %211 = vsyncadd %s205, %s210
          %s212 = sadd.s32 %s22, %s23
          %s213 = smul.addr %s212, 128
          %s214 = scalar_lea.hbm %s0, %s213
          %s216 = sshll.u32 %s208, 4
          %s217 = int_to_ptr.vmem [resolvable:$true] %s216
          %219 = dma.hbm_to_vmem [thread:$0]  %s214, 128, %s217, %s205
        $region32: #{tpu_custom_call.1} parent=27 // pred_fallthru
          _
      $region28: #{tpu_custom_call.1} parent=5 // pred_fallthru
        _
      %p220 = scmp.le.s32.totalorder 1, %s15
      %p221 = scmp.lt.s32.totalorder %s15, 5
      %p222 = pnand %p220, %p221
      %p223 = pneg %p222
      // Predicated region
      $region33: #{tpu_custom_call.1} parent=5 // pred_check
        _
      $region34: #{tpu_custom_call.1} parent=5 // pred_check_branch
        %225 = sbr.rel (%p222) target = $region36
      $region35: #{tpu_custom_call.1} parent=5 // pred_region
        %s226 = ssub.s32 %s15, 1
        %s227 = sand.u32 %s42, 1
        %s228 = scalar_lea.sflag [#allocation4], %s227
        %s229 = sand.u32 %s42, 1
        %s230 = smul.addr %s229, 8
        %s231 = scalar_lea.vmem [#allocation3], %s230
        // Predicated region
        $region37: #{tpu_custom_call.1} parent=35 // pred_check
          %p232 = pneg %p55
        $region38: #{tpu_custom_call.1} parent=35 // pred_check_branch
          %234 = sbr.rel (%p232) target = $region40
        $region39: #{tpu_custom_call.1} parent=35 // pred_region
          %235 = dma.done %s228, 128
        $region40: #{tpu_custom_call.1} parent=35 // pred_fallthru
          _
        // Predicated region
        $region41: #{tpu_custom_call.1} parent=35 // pred_check
          %p236 = pneg %p76
        $region42: #{tpu_custom_call.1} parent=35 // pred_check_branch
          %238 = sbr.rel (%p236) target = $region44
        $region43: #{tpu_custom_call.1} parent=35 // pred_region
          %239 = dma.done [#allocation7], 1024
        $region44: #{tpu_custom_call.1} parent=35 // pred_fallthru
          _
        // Predicated region
        $region45: #{tpu_custom_call.1} parent=35 // pred_check
          %p240 = pneg %p97
        $region46: #{tpu_custom_call.1} parent=35 // pred_check_branch
          %242 = sbr.rel (%p240) target = $region48
        $region47: #{tpu_custom_call.1} parent=35 // pred_region
          %243 = dma.done [#allocation7], 64
        $region48: #{tpu_custom_call.1} parent=35 // pred_fallthru
          _
        %s244 = sand.u32 %s42, 1
        %s245 = scalar_lea.sflag [#allocation4], %s244
        %s246 = sand.u32 %s42, 1
        %s247 = smul.addr %s246, 8
        %s248 = scalar_lea.vmem [#allocation3], %s247
        %p249 = pneg %p55
        %p250 = pneg %p52
        %p251 = pneg %p76
        %p252 = pneg %p73
        %p253 = pneg %p97
        %p254 = pneg %p94
        %p255 = scmp.lt.s32.totalorder %s24, 0
        %s256 = scalar_select %p255, %s24, 0
        %s257 = smul.addr %s256, 8
        %s258 = scalar_lea.vmem %s3, %s257
        %p259 = pneg %p123
        %p260 = pneg %p120
        %p261 = pneg %p149
        %p262 = pneg %p146
        %p263 = scmp.lt.s32.totalorder %s24, 0
        %s264 = scalar_select %p263, %s24, 0
        %s265 = smul.addr %s264, 8
        %s266 = scalar_lea.vmem %s3, %s265
        %p267 = scmp.eq.s32.totalorder %s25, 0
        // Predicated region
        $region49: #{tpu_custom_call.1} parent=35 // pred_check
          %p268 = pneg %p267
        $region50: #{tpu_custom_call.1} parent=35 // pred_check_branch
          %270 = sbr.rel (%p268) target = $region52
        $region51: #{tpu_custom_call.1} parent=35 // pred_region
          %vm271 = vcmask 7168
          %272 = vst.msk [vmem:[#allocation2] sm:$0xff] %vm271, 0.0
        $region52: #{tpu_custom_call.1} parent=35 // pred_fallthru
          _
        %v273 = vld [vmem:[%s231] sm:$0xff]
        %s274 = smul.u32 %s25, 16
        %s275 = scalar_lea.vmem [#allocation6], %s274
        %v276 = vld [vmem:[%s275] sm:$0xff]
        %v277 = vld [vmem:[%s275 + $0x8] sm:$0xff]
        %s278 = scalar_lea.vmem [#allocation8], %s25
        %v279 = vld [vmem:[%s278] sm:$0x1]
        %v281 = vlaneseq
        %v282 = vshrl.u32 %v281, 7
        %v283 = vsub.s32 0, %v282
        %v284 = vrot.slane %v279, %v283
        %vm286 = vcmask 130048
        %v288 = vsel %vm286, %v273, 0
        %290 = vmatprep.subr.mxu0 0.0
        %291 = vmatpush1.msra.mxu0 %v276
        %292 = vmatprep.subr.mxu0 0.0
        %293 = vmatpush1.msra.mxu0 %v277
        %294 = vmatprep.subr.mxu0 0.0
        %295 = vmatpush1.msra.mxu0 0.0
        %296 = vmatprep.subr.mxu0 0.0
        %297 = vmatpush1.msra.mxu0 0.0
        %298 = vmatprep.subr.mxu0 0.0
        %299 = vmatpush1.msra.mxu0 0.0
        %300 = vmatprep.subr.mxu0 0.0
        %301 = vmatpush1.msra.mxu0 0.0
        %302 = vmatprep.subr.mxu0 0.0
        %303 = vmatpush1.msra.mxu0 0.0
        %304 = vmatprep.subr.mxu0 0.0
        %305 = vmatpush1.msra.mxu0 0.0
        %306 = vmatprep.subr.mxu0 0.0
        %307 = vmatpush1.msra.mxu0 0.0
        %308 = vmatprep.subr.mxu0 0.0
        %309 = vmatpush1.msra.mxu0 0.0
        %310 = vmatprep.subr.mxu0 0.0
        %311 = vmatpush1.msra.mxu0 0.0
        %312 = vmatprep.subr.mxu0 0.0
        %313 = vmatpush1.msra.mxu0 0.0
        %314 = vmatprep.subr.mxu0 0.0
        %315 = vmatpush1.msra.mxu0 0.0
        %316 = vmatprep.subr.mxu0 0.0
        %317 = vmatpush1.msra.mxu0 0.0
        %318 = vmatprep.subr.mxu0 0.0
        %319 = vmatpush1.msra.mxu0 0.0
        %320 = vmatprep.subr.mxu0 0.0
        %321 = vmatpush1.msra.mxu0 0.0
        %322 = vmatprep.subr.mxu0 0.0
        %323 = vmatpush1.msra.mxu0 0.0
        %324 = vmatprep.subr.mxu0 0.0
        %325 = vmatpush1.msra.mxu0 0.0
        %326 = vmatprep.subr.mxu0 0.0
        %327 = vmatpush1.msra.mxu0 0.0
        %328 = vmatprep.subr.mxu0 0.0
        %329 = vmatpush1.msra.mxu0 0.0
        %330 = vmatprep.subr.mxu0 0.0
        %331 = vmatpush1.msra.mxu0 0.0
        %332 = vmatprep.subr.mxu0 0.0
        %333 = vmatpush1.msra.mxu0 0.0
        %334 = vmatprep.subr.mxu0 0.0
        %335 = vmatpush1.msra.mxu0 0.0
        %336 = vmatprep.subr.mxu0 0.0
        %337 = vmatpush1.msra.mxu0 0.0
        %338 = vmatprep.subr.mxu0 0.0
        %339 = vmatpush1.msra.mxu0 0.0
        %340 = vmatprep.subr.mxu0 0.0
        %341 = vmatpush1.msra.mxu0 0.0
        %342 = vmatprep.subr.mxu0 0.0
        %343 = vmatpush1.msra.mxu0 0.0
        %344 = vmatprep.subr.mxu0 0.0
        %345 = vmatpush1.msra.mxu0 0.0
        %346 = vmatprep.subr.mxu0 0.0
        %347 = vmatpush1.msra.mxu0 0.0
        %348 = vmatprep.subr.mxu0 0.0
        %349 = vmatpush1.msra.mxu0 0.0
        %350 = vmatprep.subr.mxu0 0.0
        %351 = vmatpush1.msra.mxu0 0.0
        %352 = vmatprep.subr.mxu0 0.0
        %353 = vmatpush1.msra.mxu0 0.0
        %354 = vmatprep.mubr.f32.mxu0 0.0
        %355 = vmatmul.mubr.f32.gmra.mrb[0].mxu0 %v288
        %v356 = vpop.f32.mrb[0].mxu0
        %v357 = vadd.f32 %v284, %v356
        %v358 = vpop.f32.mrb[0].mxu0
        %359 = vdwg.mxu0
        %v360 = vld [vmem:[#allocation2] sm:$0xff]
        %v361 = vmax.f32 %v357, 0.0
        %vm362 = vcmp.ne.f32.partialorder %v357, %v357
        %v363 = vadd.f32 %v357, 0.0
        %v364 = vand.u32 2147483647, %v357
        %v365 = vsub.f32 0.0, %v364
        %v366 = vmul.f32 %v365, 1.442695
        %v367 = vpow.pop %v366
        %v368 = vadd.f32 %v367, 1.0
        %v369 = vlog2.pop %v368
        %v370 = vmul.f32 %v369, 0.6931472
        %v371 = vmul.f32 -0.5, %v367
        %v372 = vadd.f32 %v371, 1.0
        %v373 = vmul.f32 %v372, %v367
        %v374 = vand.u32 2147483647, %v367
        %vm375 = vcmp.lt.f32.partialorder %v374, 0.0004427343
        %v376 = vsel %vm375, %v373, %v370
        %v377 = vadd.f32 %v361, %v376
        %v378 = vsel %vm362, %v363, %v377
        %v379 = vlog2.pop %v378
        %v380 = vmul.f32 %v379, 0.6931472
        %v381 = vsel %vm286, %v380, 0.0
        %382 = vadd.xlane.f32.xlu0 %v381
        %v383 = vpop.xlane.xlu0 %382
        %v384 = vadd.f32 %v360, %v383
        %vm385 = vcmask 7168
        %386 = vst.msk [vmem:[#allocation2] sm:$0xff] %vm385, %v384
        %p387 = scmp.eq.s32.totalorder %s25, 3
        // Predicated region
        $region53: #{tpu_custom_call.1} parent=35 // pred_check
          %p388 = pneg %p387
        $region54: #{tpu_custom_call.1} parent=35 // pred_check_branch
          %390 = sbr.rel (%p388) target = $region56
        $region55: #{tpu_custom_call.1} parent=35 // pred_region
          %v391 = vld [vmem:[%s266] sm:$0xff]
          %v392 = vmul.f32 %v391, %v391
          %vm393 = vcmask 261120
          %v394 = vsel %vm393, %v392, 0.0
          %395 = vadd.xlane.f32.xlu0 %v394
          %v396 = vpop.xlane.xlu0 %395
          %v397 = vmul.f32 %v396, 0.5
          %v398 = vld [vmem:[#allocation2] sm:$0xff]
          %v399 = vsub.f32 %v397, %v398
          %v400 = vsel %vm385, %v399, 0.0
          %401 = vadd.xlane.f32.xlu0 %v400
          %v402 = vpop.xlane.xlu0 %401
          %v403 = vrot.slane %v402, 4
          %v404 = vadd.f32 %v402, %v403
          %v405 = vrot.slane %v404, 2
          %v406 = vadd.f32 %v404, %v405
          %v407 = vrot.slane %v406, 1
          %v408 = vadd.f32 %v406, %v407
          %s409 = vtos %v408
          %v410 = vstv %s409
          %vm411 = vcmask 0
          %412 = vst.msk [vmem:[#allocation9] sm:$0x1] %vm411, %v410
        $region56: #{tpu_custom_call.1} parent=35 // pred_fallthru
          _
        // Predicated region
        $region57: #{tpu_custom_call.1} parent=35 // pred_check
          %p413 = pneg %p146
        $region58: #{tpu_custom_call.1} parent=35 // pred_check_branch
          %415 = sbr.rel (%p413) target = $region60
        $region59: #{tpu_custom_call.1} parent=35 // pred_region
          %s417 = ssub.s32 16, 16
          %418 = vsyncadd [#allocation5], %s417
          %s419 = smul.addr %s24, 16
          %s420 = scalar_lea.hbm %s4, %s419
          %s422 = sshll.u32 [#allocation9], 4
          %s423 = int_to_ptr.vmem [resolvable:$true] %s422
          %425 = dma.vmem_to_hbm [thread:$0]  %s423, 16, %s420, [#allocation5]
        $region60: #{tpu_custom_call.1} parent=35 // pred_fallthru
          _
        // Predicated region
        $region61: #{tpu_custom_call.1} parent=35 // pred_check
          %p426 = pneg %p146
        $region62: #{tpu_custom_call.1} parent=35 // pred_check_branch
          %428 = sbr.rel (%p426) target = $region64
        $region63: #{tpu_custom_call.1} parent=35 // pred_region
          %429 = dma.done [#allocation5], 16
        $region64: #{tpu_custom_call.1} parent=35 // pred_fallthru
          _
      $region36: #{tpu_custom_call.1} parent=5 // pred_fallthru
        _
      %p430 = scmp.le.s32.totalorder 2, %s15
      // Predicated region
      $region65: #{tpu_custom_call.1} parent=5 // pred_check
        %p431 = pneg %p430
      $region66: #{tpu_custom_call.1} parent=5 // pred_check_branch
        %433 = sbr.rel (%p431) target = $region68
      $region67: #{tpu_custom_call.1} parent=5 // pred_region
        %s434 = ssub.s32 %s15, 2
      $region68: #{tpu_custom_call.1} parent=5 // pred_fallthru
        _
    $region6: #{tpu_custom_call.1} parent=1 // loop_footer
      %s19 = sadd.s32 1, %s15
    $region7: #{tpu_custom_call.1} parent=1 // loop_footer_branch
      %14 = sbr.rel target = $region3
    $region8: #{tpu_custom_call.1} parent=1 // loop_exit
      _
    %435 = vsyncpa [#allocation4], 1
    %s436 = scalar_lea.sflag [#allocation4], 1
    %437 = vsyncpa %s436, 1
    %438 = vsyncpa [#allocation7], 1
    %439 = vsyncpa [#allocation5], 1
    %s440 = scalar_lea.sflag [#allocation5], 1
    %441 = vsyncpa %s440, 1

</llo_original>
